<compile_context>
chip_gen: v7x
topology: tpu7x:2x2x1
jax: 0.10.0
libtpu: 0.0.40
codegen_flags: <defaults>
</compile_context>

<pallas_src>
import jax
import jax.numpy as jnp
import numpy as np
from jax.experimental import pallas as pl
from jax.experimental.pallas import tpu as pltpu

_LANES = 1024          # lane-dense slab width (multiple of 128)
_MIN_LANES = 128
_MAX_BLOCK_ROWS = 512  # (512, 1024) f32 = 2 MiB per tile


def _round_up(x, m):
    return ((x + m - 1) // m) * m


def _bb_kernel(params_ref, x_ref, o_ref):
    """Elementwise BBModel forward on one (block_rows, lanes) tile.

    params_ref: SMEM (4,) f32 -> [a, b, c, alpha]
    x_ref/o_ref: VMEM (block_rows, lanes) f32
    """
    a = params_ref[0]
    b = params_ref[1]
    c = params_ref[2]
    alpha = params_ref[3]

    safe_x = x_ref[...] + 1.0                       # offset = 1
    sxc = jnp.maximum(safe_x, 1e-6)                 # torch.clamp(safe_x, min=1e-6)

    inv_sxc = pl.reciprocal(sxc)                    # exact; reused (replaces one divide)
    exp_term_input = jnp.minimum(b * inv_sxc, 80.0) # torch.clamp(..., max=80)
    exp_term = jnp.exp(exp_term_input)

    alpha_clamped = jnp.maximum(alpha, 0.0)         # torch.clamp(alpha, min=0)
    term1 = a * jnp.power(sxc, -alpha_clamped)

    denom = jnp.maximum(exp_term - 1.0, 1e-6)       # torch.clamp(exp_term - 1, min=1e-6)
    o_ref[...] = term1 * pl.reciprocal(denom) + c   # exact reciprocal + mul (EUP path)


def bb_model_init_params(y):
    """Deterministic parameter init, mirroring BBModel.__init__(y)."""
    y_np = np.asarray(y, dtype=np.float32)
    if y_np.size == 0:
        a_init, b_init, c_init, alpha_init = 0.0, 0.1, 0.0, 5.0
    else:
        a_init = float(y_np.max() - y_np.min())
        b_init = 0.1
        c_init = float(y_np.min())
        alpha_init = 5.0
    return jnp.array([a_init, b_init, c_init, alpha_init], dtype=jnp.float32)


def bb_model_forward(x, params, *, max_block_rows=_MAX_BLOCK_ROWS, lanes=_LANES):
    """Run the BBModel forward pass through the Pallas kernel.

    x: float32 array of any shape; params: (4,) float32 [a, b, c, alpha].
    Returns array of the same shape/dtype as x.
    """
    x = jnp.asarray(x, dtype=jnp.float32)
    orig_shape = x.shape
    flat = x.reshape(-1)
    n = int(flat.shape[0])
    if n == 0:
        return flat.reshape(orig_shape)

    # Small inputs: narrow the slab to limit padding.
    lanes = lanes if n >= lanes else _MIN_LANES
    rows = pl.cdiv(n, lanes)

    # Block rows: multiple of 8, capped at ~2 MiB tiles.
    block_rows = min(max_block_rows, _round_up(rows, 8))
    # Prefer >= 2 grid steps when there is enough work (v7x has 2 TCs).
    if rows >= 16 and block_rows >= rows:
        block_rows = max(8, _round_up(pl.cdiv(rows, 2), 8))

    padded_rows = _round_up(rows, block_rows)
    padded_n = padded_rows * lanes

    if padded_n != n:
        # TODO(synk): a masked last-tile store (pltpu.store + scalar-prefetch n)
        # would avoid this pad copy for ragged inputs; aligned inputs skip it.
        flat = jnp.pad(flat, (0, padded_n - n))
    x2d = flat.reshape(padded_rows, lanes)

    grid = (padded_rows // block_rows,)
    cost = pl.CostEstimate(
        flops=10 * padded_n,
        transcendentals=3 * padded_n,
        bytes_accessed=8 * padded_n,
    )

    out2d = pl.pallas_call(
        _bb_kernel,
        out_shape=jax.ShapeDtypeStruct((padded_rows, lanes), jnp.float32),
        grid=grid,
        in_specs=[
            pl.BlockSpec(memory_space=pltpu.MemorySpace.SMEM),      # params (4,)
            pl.BlockSpec((block_rows, lanes), lambda i: (i, 0)),
        ],
        out_specs=pl.BlockSpec((block_rows, lanes), lambda i: (i, 0)),
        compiler_params=pltpu.CompilerParams(
            dimension_semantics=("parallel",)),
        cost_estimate=cost,
    )(params, x2d)

    out_flat = out2d.reshape(-1)
    if padded_n != n:
        out_flat = out_flat[:n]
    return out_flat.reshape(orig_shape)


def _bb_model_reference(x, params):
    """Pure-JAX reference mirroring the PyTorch forward exactly."""
    a, b, c, alpha = params[0], params[1], params[2], params[3]
    safe_x = x + 1.0
    sxc = jnp.maximum(safe_x, 1e-6)
    exp_term = jnp.exp(jnp.minimum(b / sxc, 80.0))
    term1 = a * jnp.power(sxc, -jnp.maximum(alpha, 0.0))
    return term1 / jnp.maximum(exp_term - 1.0, 1e-6) + c


if __name__ == "__main__":
    key = jax.random.PRNGKey(0)
    ky, kx, kx2 = jax.random.split(key, 3)

    # y drives deterministic parameter init (as in BBModel.__init__).
    y = jax.random.uniform(ky, (64,), dtype=jnp.float32, minval=0.1, maxval=3.0)
    params = bb_model_init_params(np.asarray(y))

    # x: sample locations for the curve (small 2-D batch, positive region).
    x = jax.random.uniform(kx, (2, 1024), dtype=jnp.float32, minval=0.0, maxval=10.0)

    out = bb_model_forward(x, params)
    out = jax.block_until_ready(out)
    ref = _bb_model_reference(x, params)
    np.testing.assert_allclose(np.asarray(out), np.asarray(ref), rtol=1e-5, atol=1e-5)

    # Also exercise the ragged (padded) path with a non-aligned shape.
    x2 = jax.random.uniform(kx2, (3, 37), dtype=jnp.float32, minval=0.0, maxval=10.0)
    out2 = jax.block_until_ready(bb_model_forward(x2, params))
    ref2 = _bb_model_reference(x2, params)
    np.testing.assert_allclose(np.asarray(out2), np.asarray(ref2), rtol=1e-5, atol=1e-5)

    print("KERNEL_OK")
</pallas_src>

<mosaic_0001>
module attributes {stable_mosaic.version = 11 : i64} {
  func.func @_bb_kernel(%arg0: i32, %arg1: memref<4xf32, #tpu.memory_space<smem>>, %arg2: memref<8x1024xf32, #tpu.memory_space<vmem>>, %arg3: memref<8x1024xf32, #tpu.memory_space<vmem>>) attributes {dimension_semantics = [#tpu.dimension_semantics<parallel>], iteration_bounds = array<i64: 1>, scalar_prefetch = 0 : i64, scratch_operands = 0 : i64, tpu.core_type = #tpu.core_type<tc>, window_params = [{transform_indices = @transform_0, window_bounds = array<i64: 4>}, {transform_indices = @transform_1, window_bounds = array<i64: 8, 1024>}, {transform_indices = @transform_2, window_bounds = array<i64: 8, 1024>}]} {
    %c0 = arith.constant 0 : index
    %0 = memref.load %arg1[%c0] : memref<4xf32, #tpu.memory_space<smem>>
    %c1 = arith.constant 1 : index
    %1 = memref.load %arg1[%c1] : memref<4xf32, #tpu.memory_space<smem>>
    %c2 = arith.constant 2 : index
    %2 = memref.load %arg1[%c2] : memref<4xf32, #tpu.memory_space<smem>>
    %c3 = arith.constant 3 : index
    %3 = memref.load %arg1[%c3] : memref<4xf32, #tpu.memory_space<smem>>
    %c0_0 = arith.constant 0 : index
    %c0_1 = arith.constant 0 : index
    %4 = vector.load %arg2[%c0_0, %c0_1] : memref<8x1024xf32, #tpu.memory_space<vmem>>, vector<8x1024xf32>
    %cst = arith.constant 1.000000e+00 : f32
    %5 = vector.broadcast %cst : f32 to vector<8x1024xf32>
    %6 = arith.addf %4, %5 : vector<8x1024xf32>
    %cst_2 = arith.constant 9.99999997E-7 : f32
    %7 = vector.broadcast %cst_2 : f32 to vector<8x1024xf32>
    %8 = arith.maximumf %6, %7 : vector<8x1024xf32>
    %9 = tpu.reciprocal %8 : vector<8x1024xf32> -> vector<8x1024xf32>
    %10 = vector.broadcast %1 : f32 to vector<8x1024xf32>
    %11 = arith.mulf %10, %9 : vector<8x1024xf32>
    %cst_3 = arith.constant 8.000000e+01 : f32
    %12 = vector.broadcast %cst_3 : f32 to vector<8x1024xf32>
    %13 = arith.minimumf %11, %12 : vector<8x1024xf32>
    %14 = math.exp %13 : vector<8x1024xf32>
    %cst_4 = arith.constant 0.000000e+00 : f32
    %15 = arith.maximumf %3, %cst_4 : f32
    %cst_5 = arith.constant 0.000000e+00 : f32
    %16 = arith.subf %cst_5, %15 : f32
    %17 = vector.broadcast %16 : f32 to vector<8x1024xf32>
    %18 = math.powf %8, %17 : vector<8x1024xf32>
    %19 = vector.broadcast %0 : f32 to vector<8x1024xf32>
    %20 = arith.mulf %19, %18 : vector<8x1024xf32>
    %cst_6 = arith.constant 1.000000e+00 : f32
    %21 = vector.broadcast %cst_6 : f32 to vector<8x1024xf32>
    %22 = arith.subf %14, %21 : vector<8x1024xf32>
    %cst_7 = arith.constant 9.99999997E-7 : f32
    %23 = vector.broadcast %cst_7 : f32 to vector<8x1024xf32>
    %24 = arith.maximumf %22, %23 : vector<8x1024xf32>
    %25 = tpu.reciprocal %24 : vector<8x1024xf32> -> vector<8x1024xf32>
    %26 = arith.mulf %20, %25 : vector<8x1024xf32>
    %27 = vector.broadcast %2 : f32 to vector<8x1024xf32>
    %28 = arith.addf %26, %27 : vector<8x1024xf32>
    %c0_8 = arith.constant 0 : index
    %c0_9 = arith.constant 0 : index
    %29 = vector.load %arg3[%c0_8, %c0_9] : memref<8x1024xf32, #tpu.memory_space<vmem>>, vector<8x1024xf32>
    tpu.vector_store %arg3[%c0_8, %c0_9], %28 {strides = array<i32>} : memref<8x1024xf32, #tpu.memory_space<vmem>>, vector<8x1024xf32>,
    return
  }
  func.func @transform_0(%arg0: i32) -> i32 {
    %c0_i32 = arith.constant 0 : i32
    %c0_i32_0 = arith.constant 0 : i32
    return %c0_i32 : i32
  }
  func.func @transform_1(%arg0: i32) -> (i32, i32) {
    %c0_i32 = arith.constant 0 : i32
    %c0_i32_0 = arith.constant 0 : i32
    return %arg0, %c0_i32 : i32, i32
  }
  func.func @transform_2(%arg0: i32) -> (i32, i32) {
    %c0_i32 = arith.constant 0 : i32
    %c0_i32_0 = arith.constant 0 : i32
    return %arg0, %c0_i32 : i32, i32
  }
}

</mosaic_0001>

<llo_original>
// kernel: tpu_custom_call.1
$region0: #{tpu_custom_call.1}
  #allocation0 [shape = 'u32[]', space=smem, size = 0x4, offset = 0x4, fixed_abs, tag = 'smem constant byte address 0x4 - core index']
  #allocation1 [shape = 'u32[144,128]{1,0:T(1,128)}', space=vmem, size = 0x12000, scoped, tag = 'internal scratch']
  %s0 = inlined_call_operand.hbm [shape: f32[4], index: 0, kind: input, shape index: {}]
  %s1 = inlined_call_operand.hbm [shape: f32[8,1024], index: 1, kind: input, shape index: {}]
  %s2 = inlined_call_operand.hbm [shape: f32[8,1024], index: 2, kind: output, shape index: {}]
  %s3 = sld [smem:[#allocation0]]
  $region26: #{tpu_custom_call.1} parent=0
    _
  %s5 = ssub.s32 1, %s3
  %s6 = scalar_select 0, %s5, %s3
  $region1: #{tpu_custom_call.1} parent=0
    #allocation2 [shape = 'u8[512]{0}', space=smem, size = 0x200, scoped, tag = 'input window, operand 0, single buffered']
    #allocation3 [shape = 's32[1]{0}', space=sflag, size = 0x4, scoped, tag = 'scoped memory for tpu_custom_call.1']
    #allocation4 [shape = 's32[1]{0}', space=sflag, size = 0x4, scoped, tag = 'scoped memory for tpu_custom_call.1']
    #allocation5 [shape = 's32[1]{0}', space=sflag, size = 0x4, scoped, tag = 'scoped memory for tpu_custom_call.1']
    #allocation6 [shape = 'u8[32768]{0}', space=vmem, size = 0x8000, scoped, tag = 'input window, operand 1, single buffered']
    #allocation7 [shape = 'u8[32768]{0}', space=vmem, size = 0x8000, scoped, tag = 'output window, operand 0, single buffered']
    %7 = vsyncpa [#allocation5], 0
    %8 = vsyncpa [#allocation3], 0
    %9 = vsyncpa [#allocation4], 0
    // Predicated region
    $region2: #{tpu_custom_call.1} parent=1 // pred_check
      _
    $region3: #{tpu_custom_call.1} parent=1 // pred_check_branch
      %11 = sbr.rel (0) target = $region5
    $region4: #{tpu_custom_call.1} parent=1 // pred_region
      %s13 = ssub.s32 16, 16
      %14 = vsyncadd [#allocation5], %s13
      %17 = dma.hbm_to_smem %s0, 16, [#allocation2], [#allocation5]
    $region5: #{tpu_custom_call.1} parent=1 // pred_fallthru
      _
    // Predicated region
    $region6: #{tpu_custom_call.1} parent=1 // pred_check
      _
    $region7: #{tpu_custom_call.1} parent=1 // pred_check_branch
      %19 = sbr.rel (0) target = $region9
    $region8: #{tpu_custom_call.1} parent=1 // pred_region
      %s21 = ssub.s32 1024, 1024
      %22 = vsyncadd [#allocation3], %s21
      %s24 = sshll.u32 [#allocation6], 4
      %s25 = int_to_ptr.vmem [resolvable:$true] %s24
      %27 = dma.hbm_to_vmem [thread:$0]  %s1, 1024, %s25, [#allocation3]
    $region9: #{tpu_custom_call.1} parent=1 // pred_fallthru
      _
    // Predicated region
    $region10: #{tpu_custom_call.1} parent=1 // pred_check
      _
    $region11: #{tpu_custom_call.1} parent=1 // pred_check_branch
      %29 = sbr.rel (0) target = $region13
    $region12: #{tpu_custom_call.1} parent=1 // pred_region
      %30 = dma.done [#allocation5], 16
    $region13: #{tpu_custom_call.1} parent=1 // pred_fallthru
      _
    // Predicated region
    $region14: #{tpu_custom_call.1} parent=1 // pred_check
      _
    $region15: #{tpu_custom_call.1} parent=1 // pred_check_branch
      %32 = sbr.rel (0) target = $region17
    $region16: #{tpu_custom_call.1} parent=1 // pred_region
      %33 = dma.done [#allocation3], 1024
    $region17: #{tpu_custom_call.1} parent=1 // pred_fallthru
      _
    %34 = sfence
    %s35 = sld [smem:[#allocation2]]
    %s36 = sld [smem:[#allocation2 + $0x1]]
    %s37 = sld [smem:[#allocation2 + $0x2]]
    %s38 = sld [smem:[#allocation2 + $0x3]]
    %v39 = vld [vmem:[#allocation6] sm:$0xff]
    %v40 = vld [vmem:[#allocation6 + $0x8] sm:$0xff]
    %v41 = vld [vmem:[#allocation6 + $0x10] sm:$0xff]
    %v42 = vld [vmem:[#allocation6 + $0x18] sm:$0xff]
    %v43 = vld [vmem:[#allocation6 + $0x20] sm:$0xff]
    %v44 = vld [vmem:[#allocation6 + $0x28] sm:$0xff]
    %v45 = vld [vmem:[#allocation6 + $0x30] sm:$0xff]
    %v46 = vld [vmem:[#allocation6 + $0x38] sm:$0xff]
    %v47 = vadd.f32 %v39, 1.0
    %v48 = vadd.f32 %v40, 1.0
    %v49 = vadd.f32 %v41, 1.0
    %v50 = vadd.f32 %v42, 1.0
    %v51 = vadd.f32 %v43, 1.0
    %v52 = vadd.f32 %v44, 1.0
    %v53 = vadd.f32 %v45, 1.0
    %v54 = vadd.f32 %v46, 1.0
    %v55 = vmax.f32 %v47, 1e-06
    %v56 = vmax.f32 %v48, 1e-06
    %v57 = vmax.f32 %v49, 1e-06
    %v58 = vmax.f32 %v50, 1e-06
    %v59 = vmax.f32 %v51, 1e-06
    %v60 = vmax.f32 %v52, 1e-06
    %v61 = vmax.f32 %v53, 1e-06
    %v62 = vmax.f32 %v54, 1e-06
    %v63 = vrcp.pop %v55
    %v64 = vrcp.pop %v56
    %v65 = vrcp.pop %v57
    %v66 = vrcp.pop %v58
    %v67 = vrcp.pop %v59
    %v68 = vrcp.pop %v60
    %v69 = vrcp.pop %v61
    %v70 = vrcp.pop %v62
    %v71 = vstv %s36
    %v72 = vmul.f32 %v71, %v63
    %v73 = vmul.f32 %v71, %v64
    %v74 = vmul.f32 %v71, %v65
    %v75 = vmul.f32 %v71, %v66
    %v76 = vmul.f32 %v71, %v67
    %v77 = vmul.f32 %v71, %v68
    %v78 = vmul.f32 %v71, %v69
    %v79 = vmul.f32 %v71, %v70
    %v80 = vmin.f32 %v72, 80.0
    %v81 = vmin.f32 %v73, 80.0
    %v82 = vmin.f32 %v74, 80.0
    %v83 = vmin.f32 %v75, 80.0
    %v84 = vmin.f32 %v76, 80.0
    %v85 = vmin.f32 %v77, 80.0
    %v86 = vmin.f32 %v78, 80.0
    %v87 = vmin.f32 %v79, 80.0
    %v88 = vmul.f32 %v80, 1.442695
    %v89 = vpow.pop %v88
    %v90 = vmul.f32 %v81, 1.442695
    %v91 = vpow.pop %v90
    %v92 = vmul.f32 %v82, 1.442695
    %v93 = vpow.pop %v92
    %v94 = vmul.f32 %v83, 1.442695
    %v95 = vpow.pop %v94
    %v96 = vmul.f32 %v84, 1.442695
    %v97 = vpow.pop %v96
    %v98 = vmul.f32 %v85, 1.442695
    %v99 = vpow.pop %v98
    %v100 = vmul.f32 %v86, 1.442695
    %v101 = vpow.pop %v100
    %v102 = vmul.f32 %v87, 1.442695
    %v103 = vpow.pop %v102
    %s104 = smax.f32 %s38, 0.0
    %s105 = ssub.f32 0.0, %s104
    %v106 = vstv %s105
    %v107 = vpow.f32 %v55, %v106
    %v108 = vpow.f32 %v56, %v106
    %v109 = vpow.f32 %v57, %v106
    %v110 = vpow.f32 %v58, %v106
    %v111 = vpow.f32 %v59, %v106
    %v112 = vpow.f32 %v60, %v106
    %v113 = vpow.f32 %v61, %v106
    %v114 = vpow.f32 %v62, %v106
    %v115 = vstv %s35
    %v116 = vmul.f32 %v115, %v107
    %v117 = vmul.f32 %v115, %v108
    %v118 = vmul.f32 %v115, %v109
    %v119 = vmul.f32 %v115, %v110
    %v120 = vmul.f32 %v115, %v111
    %v121 = vmul.f32 %v115, %v112
    %v122 = vmul.f32 %v115, %v113
    %v123 = vmul.f32 %v115, %v114
    %v124 = vsub.f32 %v89, 1.0
    %v125 = vsub.f32 %v91, 1.0
    %v126 = vsub.f32 %v93, 1.0
    %v127 = vsub.f32 %v95, 1.0
    %v128 = vsub.f32 %v97, 1.0
    %v129 = vsub.f32 %v99, 1.0
    %v130 = vsub.f32 %v101, 1.0
    %v131 = vsub.f32 %v103, 1.0
    %v132 = vmax.f32 %v124, 1e-06
    %v133 = vmax.f32 %v125, 1e-06
    %v134 = vmax.f32 %v126, 1e-06
    %v135 = vmax.f32 %v127, 1e-06
    %v136 = vmax.f32 %v128, 1e-06
    %v137 = vmax.f32 %v129, 1e-06
    %v138 = vmax.f32 %v130, 1e-06
    %v139 = vmax.f32 %v131, 1e-06
    %v140 = vrcp.pop %v132
    %v141 = vrcp.pop %v133
    %v142 = vrcp.pop %v134
    %v143 = vrcp.pop %v135
    %v144 = vrcp.pop %v136
    %v145 = vrcp.pop %v137
    %v146 = vrcp.pop %v138
    %v147 = vrcp.pop %v139
    %v148 = vmul.f32 %v116, %v140
    %v149 = vmul.f32 %v117, %v141
    %v150 = vmul.f32 %v118, %v142
    %v151 = vmul.f32 %v119, %v143
    %v152 = vmul.f32 %v120, %v144
    %v153 = vmul.f32 %v121, %v145
    %v154 = vmul.f32 %v122, %v146
    %v155 = vmul.f32 %v123, %v147
    %v156 = vstv %s37
    %v157 = vadd.f32 %v148, %v156
    %v158 = vadd.f32 %v149, %v156
    %v159 = vadd.f32 %v150, %v156
    %v160 = vadd.f32 %v151, %v156
    %v161 = vadd.f32 %v152, %v156
    %v162 = vadd.f32 %v153, %v156
    %v163 = vadd.f32 %v154, %v156
    %v164 = vadd.f32 %v155, %v156
    %165 = vst [vmem:[#allocation7] sm:$0xff] %v157
    %166 = vst [vmem:[#allocation7 + $0x8] sm:$0xff] %v158
    %167 = vst [vmem:[#allocation7 + $0x10] sm:$0xff] %v159
    %168 = vst [vmem:[#allocation7 + $0x18] sm:$0xff] %v160
    %169 = vst [vmem:[#allocation7 + $0x20] sm:$0xff] %v161
    %170 = vst [vmem:[#allocation7 + $0x28] sm:$0xff] %v162
    %171 = vst [vmem:[#allocation7 + $0x30] sm:$0xff] %v163
    %172 = vst [vmem:[#allocation7 + $0x38] sm:$0xff] %v164
    // Predicated region
    $region18: #{tpu_custom_call.1} parent=1 // pred_check
      _
    $region19: #{tpu_custom_call.1} parent=1 // pred_check_branch
      %174 = sbr.rel (0) target = $region21
    $region20: #{tpu_custom_call.1} parent=1 // pred_region
      %s176 = ssub.s32 1024, 1024
      %177 = vsyncadd [#allocation4], %s176
      %s179 = sshll.u32 [#allocation7], 4
      %s180 = int_to_ptr.vmem [resolvable:$true] %s179
      %182 = dma.vmem_to_hbm [thread:$0]  %s180, 1024, %s2, [#allocation4]
    $region21: #{tpu_custom_call.1} parent=1 // pred_fallthru
      _
    // Predicated region
    $region22: #{tpu_custom_call.1} parent=1 // pred_check
      _
    $region23: #{tpu_custom_call.1} parent=1 // pred_check_branch
      %184 = sbr.rel (0) target = $region25
    $region24: #{tpu_custom_call.1} parent=1 // pred_region
      %185 = dma.done [#allocation4], 1024
    $region25: #{tpu_custom_call.1} parent=1 // pred_fallthru
      _
    %186 = vsyncpa [#allocation3], 1
    %187 = vsyncpa [#allocation4], 1
    %188 = vsyncpa [#allocation5], 1

</llo_original>
